<compile_context>
chip_gen: v7x
topology: tpu7x:2x2x1
jax: 0.10.0
libtpu: 0.0.40
codegen_flags: <defaults>
</compile_context>

<pallas_src>
import functools

import jax
import jax.numpy as jnp
from jax.experimental import pallas as pl
from jax.experimental.pallas import tpu as pltpu


def mlp_kernel(xt_ref, w1_ref, b1_ref, w2_ref, b2_ref, w3_ref, b3_ref, ot_ref):
    """One batch tile. Activations are [features, TB] (batch on the lane axis)."""
    mxu_dtype = w1_ref.dtype
    xt = xt_ref[...]                                                    # [in, TB]

    # fc1 + ReLU  (bf16 MXU operands, f32 accumulation / elementwise)
    h1 = jnp.dot(w1_ref[...], xt, preferred_element_type=jnp.float32)  # [h1, TB] f32
    h1 = jnp.maximum(h1 + b1_ref[...], 0.0)

    # fc2 + ReLU
    h2 = jnp.dot(w2_ref[...], h1.astype(mxu_dtype),
                 preferred_element_type=jnp.float32)                   # [h2, TB] f32
    h2 = jnp.maximum(h2 + b2_ref[...], 0.0)

    # fc3 (no activation)
    out = jnp.dot(w3_ref[...], h2.astype(mxu_dtype),
                  preferred_element_type=jnp.float32)                  # [out, TB] f32
    ot_ref[...] = (out + b3_ref[...]).astype(ot_ref.dtype)             # lane-dense store


def _round_up(x, m):
    return (x + m - 1) // m * m


@functools.partial(jax.jit, static_argnames=("tile_b", "mxu_dtype"))
def mlp_forward(x, w1, b1, w2, b2, w3, b3, *, tile_b=256, mxu_dtype=jnp.bfloat16):
    """x: [B, in].  Weights in PyTorch nn.Linear layout: w_i [out_i, in_i], b_i [out_i].
    Returns [B, out] float32 -- same math as fc3(relu(fc2(relu(fc1(x)))))."""
    B, in_f = x.shape
    out_f = w3.shape[0]

    tb = max(128, min(_round_up(tile_b, 128), _round_up(B, 128)))   # lane-aligned tile
    bp = _round_up(B, tb)

    # Layout plumbing: batch on the lane axis, zero-pad batch to a tile multiple.
    xt = jnp.transpose(x)                                           # [in, B]
    if bp != B:
        xt = jnp.pad(xt, ((0, 0), (0, bp - B)))
    xt = xt.astype(mxu_dtype)

    w1c, w2c, w3c = (w.astype(mxu_dtype) for w in (w1, w2, w3))
    b1c, b2c, b3c = (b.astype(jnp.float32).reshape(-1, 1) for b in (b1, b2, b3))

    # Constant index_map -> block is VMEM-resident across grid steps (DMA'd once).
    const = lambda a: pl.BlockSpec(a.shape, lambda i: (0, 0))

    out_t = pl.pallas_call(
        mlp_kernel,
        out_shape=jax.ShapeDtypeStruct((out_f, bp), jnp.float32),
        grid=(bp // tb,),
        in_specs=[
            pl.BlockSpec((in_f, tb), lambda i: (0, i)),   # x tile, pipelined over batch
            const(w1c), const(b1c),
            const(w2c), const(b2c),
            const(w3c), const(b3c),
        ],
        out_specs=pl.BlockSpec((out_f, tb), lambda i: (0, i)),
        compiler_params=pltpu.CompilerParams(dimension_semantics=("parallel",)),
    )(xt, w1c, b1c, w2c, b2c, w3c, b3c)

    return jnp.transpose(out_t)[:B].astype(jnp.float32)              # [B, out]


def init_linear_params(key, in_features, out_features):
    """Deterministic init mimicking nn.Linear's uniform(-1/sqrt(in), 1/sqrt(in)).
    Weight is kept in PyTorch's native [out_features, in_features] layout."""
    kw, kb = jax.random.split(key)
    bound = 1.0 / jnp.sqrt(jnp.float32(in_features))
    w = jax.random.uniform(kw, (out_features, in_features), jnp.float32,
                           minval=-bound, maxval=bound)
    b = jax.random.uniform(kb, (out_features,), jnp.float32,
                           minval=-bound, maxval=bound)
    return w, b


def ref_forward(x, w1, b1, w2, b2, w3, b3, mxu_dtype=jnp.bfloat16):
    """Plain-JAX reference mirroring the kernel's numerics (bf16 operands, f32 accum)."""
    h = jnp.dot(x.astype(mxu_dtype), w1.T.astype(mxu_dtype),
                preferred_element_type=jnp.float32) + b1
    h = jnp.maximum(h, 0.0)
    h = jnp.dot(h.astype(mxu_dtype), w2.T.astype(mxu_dtype),
                preferred_element_type=jnp.float32) + b2
    h = jnp.maximum(h, 0.0)
    return jnp.dot(h.astype(mxu_dtype), w3.T.astype(mxu_dtype),
                   preferred_element_type=jnp.float32) + b3


if __name__ == "__main__":
    # Small shapes consistent with the module's forward (pure MLP on [B, input_size]).
    batch = 512                       # 2 grid steps at TB=256 to exercise pipelining
    input_size, hidden1_size, hidden2_size, output_size = 32, 64, 32, 8

    key = jax.random.PRNGKey(0)
    kx, k1, k2, k3 = jax.random.split(key, 4)

    x = jax.random.normal(kx, (batch, input_size), jnp.float32)
    w1, b1 = init_linear_params(k1, input_size, hidden1_size)
    w2, b2 = init_linear_params(k2, hidden1_size, hidden2_size)
    w3, b3 = init_linear_params(k3, hidden2_size, output_size)

    out = mlp_forward(x, w1, b1, w2, b2, w3, b3)
    jax.block_until_ready(out)

    ref = ref_forward(x, w1, b1, w2, b2, w3, b3)
    assert out.shape == ref.shape
    assert jnp.allclose(out, ref, atol=1e-3, rtol=1e-3), "mismatch vs reference"

    print("KERNEL_OK")
</pallas_src>

<mosaic_0001>
module attributes {stable_mosaic.version = 11 : i64} {
  func.func @mlp_kernel(%arg0: i32, %arg1: memref<32x256xbf16, #tpu.memory_space<vmem>>, %arg2: memref<64x32xbf16, #tpu.memory_space<vmem>>, %arg3: memref<64x1xf32, #tpu.memory_space<vmem>>, %arg4: memref<32x64xbf16, #tpu.memory_space<vmem>>, %arg5: memref<32x1xf32, #tpu.memory_space<vmem>>, %arg6: memref<8x32xbf16, #tpu.memory_space<vmem>>, %arg7: memref<8x1xf32, #tpu.memory_space<vmem>>, %arg8: memref<8x256xf32, #tpu.memory_space<vmem>>) attributes {dimension_semantics = [#tpu.dimension_semantics<parallel>], iteration_bounds = array<i64: 2>, scalar_prefetch = 0 : i64, scratch_operands = 0 : i64, tpu.core_type = #tpu.core_type<tc>, window_params = [{transform_indices = @transform_0, window_bounds = array<i64: 32, 256>}, {pipeline_mode = #tpu.pipeline_mode<synchronous>, transform_indices = @transform_1, window_bounds = array<i64: 64, 32>}, {pipeline_mode = #tpu.pipeline_mode<synchronous>, transform_indices = @transform_2, window_bounds = array<i64: 64, 1>}, {pipeline_mode = #tpu.pipeline_mode<synchronous>, transform_indices = @transform_3, window_bounds = array<i64: 32, 64>}, {pipeline_mode = #tpu.pipeline_mode<synchronous>, transform_indices = @transform_4, window_bounds = array<i64: 32, 1>}, {pipeline_mode = #tpu.pipeline_mode<synchronous>, transform_indices = @transform_5, window_bounds = array<i64: 8, 32>}, {pipeline_mode = #tpu.pipeline_mode<synchronous>, transform_indices = @transform_6, window_bounds = array<i64: 8, 1>}, {transform_indices = @transform_7, window_bounds = array<i64: 8, 256>}]} {
    %c0 = arith.constant 0 : index
    %c0_0 = arith.constant 0 : index
    %0 = vector.load %arg1[%c0, %c0_0] : memref<32x256xbf16, #tpu.memory_space<vmem>>, vector<32x256xbf16>
    %c0_1 = arith.constant 0 : index
    %c0_2 = arith.constant 0 : index
    %1 = vector.load %arg2[%c0_1, %c0_2] : memref<64x32xbf16, #tpu.memory_space<vmem>>, vector<64x32xbf16>
    %cst = arith.constant dense<0.000000e+00> : vector<64x256xf32>
    %2 = tpu.matmul %1, %0, %cst {dimension_numbers = #tpu.dot_dimension_numbers<[1], [0], [0], [1], [0, 0, 1, 1], [], []>} : vector<64x32xbf16>, vector<32x256xbf16>, vector<64x256xf32> -> vector<64x256xf32>
    %c0_3 = arith.constant 0 : index
    %c0_4 = arith.constant 0 : index
    %3 = vector.load %arg3[%c0_3, %c0_4] : memref<64x1xf32, #tpu.memory_space<vmem>>, vector<64x1xf32>
    %4 = vector.broadcast %3 : vector<64x1xf32> to vector<64x256xf32>
    %5 = arith.addf %2, %4 : vector<64x256xf32>
    %cst_5 = arith.constant 0.000000e+00 : f32
    %6 = vector.broadcast %cst_5 : f32 to vector<64x256xf32>
    %7 = arith.maximumf %5, %6 : vector<64x256xf32>
    %c0_6 = arith.constant 0 : index
    %c0_7 = arith.constant 0 : index
    %8 = vector.load %arg4[%c0_6, %c0_7] : memref<32x64xbf16, #tpu.memory_space<vmem>>, vector<32x64xbf16>
    %9 = arith.truncf %7 : vector<64x256xf32> to vector<64x256xbf16>
    %cst_8 = arith.constant dense<0.000000e+00> : vector<32x256xf32>
    %10 = tpu.matmul %8, %9, %cst_8 {dimension_numbers = #tpu.dot_dimension_numbers<[1], [0], [0], [1], [0, 0, 1, 1], [], []>} : vector<32x64xbf16>, vector<64x256xbf16>, vector<32x256xf32> -> vector<32x256xf32>
    %c0_9 = arith.constant 0 : index
    %c0_10 = arith.constant 0 : index
    %11 = vector.load %arg5[%c0_9, %c0_10] : memref<32x1xf32, #tpu.memory_space<vmem>>, vector<32x1xf32>
    %12 = vector.broadcast %11 : vector<32x1xf32> to vector<32x256xf32>
    %13 = arith.addf %10, %12 : vector<32x256xf32>
    %cst_11 = arith.constant 0.000000e+00 : f32
    %14 = vector.broadcast %cst_11 : f32 to vector<32x256xf32>
    %15 = arith.maximumf %13, %14 : vector<32x256xf32>
    %c0_12 = arith.constant 0 : index
    %c0_13 = arith.constant 0 : index
    %16 = vector.load %arg6[%c0_12, %c0_13] : memref<8x32xbf16, #tpu.memory_space<vmem>>, vector<8x32xbf16>
    %17 = arith.truncf %15 : vector<32x256xf32> to vector<32x256xbf16>
    %cst_14 = arith.constant dense<0.000000e+00> : vector<8x256xf32>
    %18 = tpu.matmul %16, %17, %cst_14 {dimension_numbers = #tpu.dot_dimension_numbers<[1], [0], [0], [1], [0, 0, 1, 1], [], []>} : vector<8x32xbf16>, vector<32x256xbf16>, vector<8x256xf32> -> vector<8x256xf32>
    %c0_15 = arith.constant 0 : index
    %c0_16 = arith.constant 0 : index
    %19 = vector.load %arg7[%c0_15, %c0_16] : memref<8x1xf32, #tpu.memory_space<vmem>>, vector<8x1xf32>
    %20 = vector.broadcast %19 : vector<8x1xf32> to vector<8x256xf32>
    %21 = arith.addf %18, %20 : vector<8x256xf32>
    %c0_17 = arith.constant 0 : index
    %c0_18 = arith.constant 0 : index
    %22 = vector.load %arg8[%c0_17, %c0_18] : memref<8x256xf32, #tpu.memory_space<vmem>>, vector<8x256xf32>
    tpu.vector_store %arg8[%c0_17, %c0_18], %21 {strides = array<i32>} : memref<8x256xf32, #tpu.memory_space<vmem>>, vector<8x256xf32>,
    return
  }
  func.func @transform_0(%arg0: i32) -> (i32, i32) {
    %c0_i32 = arith.constant 0 : i32
    %c0_i32_0 = arith.constant 0 : i32
    return %c0_i32, %arg0 : i32, i32
  }
  func.func @transform_1(%arg0: i32) -> (i32, i32) {
    %c0_i32 = arith.constant 0 : i32
    %c0_i32_0 = arith.constant 0 : i32
    %c0_i32_1 = arith.constant 0 : i32
    return %c0_i32, %c0_i32_0 : i32, i32
  }
  func.func @transform_2(%arg0: i32) -> (i32, i32) {
    %c0_i32 = arith.constant 0 : i32
    %c0_i32_0 = arith.constant 0 : i32
    %c0_i32_1 = arith.constant 0 : i32
    return %c0_i32, %c0_i32_0 : i32, i32
  }
  func.func @transform_3(%arg0: i32) -> (i32, i32) {
    %c0_i32 = arith.constant 0 : i32
    %c0_i32_0 = arith.constant 0 : i32
    %c0_i32_1 = arith.constant 0 : i32
    return %c0_i32, %c0_i32_0 : i32, i32
  }
  func.func @transform_4(%arg0: i32) -> (i32, i32) {
    %c0_i32 = arith.constant 0 : i32
    %c0_i32_0 = arith.constant 0 : i32
    %c0_i32_1 = arith.constant 0 : i32
    return %c0_i32, %c0_i32_0 : i32, i32
  }
  func.func @transform_5(%arg0: i32) -> (i32, i32) {
    %c0_i32 = arith.constant 0 : i32
    %c0_i32_0 = arith.constant 0 : i32
    %c0_i32_1 = arith.constant 0 : i32
    return %c0_i32, %c0_i32_0 : i32, i32
  }
  func.func @transform_6(%arg0: i32) -> (i32, i32) {
    %c0_i32 = arith.constant 0 : i32
    %c0_i32_0 = arith.constant 0 : i32
    %c0_i32_1 = arith.constant 0 : i32
    return %c0_i32, %c0_i32_0 : i32, i32
  }
  func.func @transform_7(%arg0: i32) -> (i32, i32) {
    %c0_i32 = arith.constant 0 : i32
    %c0_i32_0 = arith.constant 0 : i32
    return %c0_i32, %arg0 : i32, i32
  }
}

</mosaic_0001>

<llo_original>
// kernel: mlp_forward.1
$region0: #{mlp_forward.1}
  #allocation0 [shape = 'u32[]', space=smem, size = 0x4, offset = 0x4, fixed_abs, tag = 'smem constant byte address 0x4 - core index']
  #allocation1 [shape = 'u32[144,128]{1,0:T(1,128)}', space=vmem, size = 0x12000, scoped, tag = 'internal scratch']
  %s0 = inlined_call_operand.vmem [shape: bf16[32,512], index: 0, kind: input, shape index: {}]
  %s1 = inlined_call_operand.vmem [shape: bf16[64,32], index: 1, kind: input, shape index: {}]
  %s2 = inlined_call_operand.vmem [shape: f32[64,1], index: 2, kind: input, shape index: {}]
  %s3 = inlined_call_operand.vmem [shape: bf16[32,64], index: 3, kind: input, shape index: {}]
  %s4 = inlined_call_operand.vmem [shape: f32[32,1], index: 4, kind: input, shape index: {}]
  %s5 = inlined_call_operand.vmem [shape: bf16[8,32], index: 5, kind: input, shape index: {}]
  %s6 = inlined_call_operand.vmem [shape: f32[8,1], index: 6, kind: input, shape index: {}]
  %s7 = inlined_call_operand.hbm [shape: f32[8,512], index: 7, kind: output, shape index: {}]
  %s8 = sld [smem:[#allocation0]]
  $region99: #{mlp_forward.1} parent=0
    _
  %s10 = ssub.s32 1, %s8
  %s11 = scalar_select 0, %s10, %s8
  $region1: #{mlp_forward.1} parent=0
    #allocation2 [shape = 'u8[32768]{0}', space=vmem, size = 0x8000, scoped, tag = 'input window, operand 0']
    #allocation3 [shape = 'u8[16384]{0}', space=vmem, size = 0x4000, scoped, tag = 'output window, operand 0']
    #allocation4 [shape = 's32[2]{0}', space=sflag, size = 0x8, scoped, tag = 'scoped memory for mlp_forward.1']
    %12 = vsyncpa [#allocation4], 0
    %s13 = scalar_lea.sflag [#allocation4], 1
    %14 = vsyncpa %s13, 0
    loop: start=0, step=1, limit=4
    $region2: #{mlp_forward.1} parent=1 // loop_pre_header
      _
    $region3: #{mlp_forward.1} parent=1 // loop_header
      %s16 = sphi 0, %s20
      %p17 = scmp.ge.s32.totalorder %s16, 4
      %s26 = sphi 0, %s28
      %s29 = sphi 0, %s26
      %s30 = sphi 0, %s29
      %s46 = sphi 0, %s30
      %s50 = sphi 0, %s50
      %s52 = sphi 0, %s50
      %s53 = sphi 0, %s52
      %s67 = sphi 0, %s53
      %s71 = sphi 0, %s71
      %s73 = sphi 0, %s71
      %s74 = sphi 0, %s73
      %s88 = sphi 0, %s74
      %s92 = sphi 0, %s92
      %s94 = sphi 0, %s92
      %s95 = sphi 0, %s94
      %s109 = sphi 0, %s95
      %s113 = sphi 0, %s113
      %s115 = sphi 0, %s113
      %s116 = sphi 0, %s115
      %s130 = sphi 0, %s116
      %s134 = sphi 0, %s134
      %s136 = sphi 0, %s134
      %s137 = sphi 0, %s136
      %s151 = sphi 0, %s137
      %s155 = sphi 0, %s155
      %s157 = sphi 0, %s155
      %s158 = sphi 0, %s157
      %s172 = sphi 0, %s158
      %s178 = sphi 0, %s180
      %s181 = sphi 0, %s178
      %s182 = sphi 0, %s181
      %s198 = sphi 0, %s182
    $region4: #{mlp_forward.1} parent=1 // loop_header_branch
      %19 = sbr.rel (%p17) target = $region8
    $region5: #{mlp_forward.1} parent=1 // loop_body
      %s21 = ssub.s32 %s16, 1
      %s22 = ssub.s32 %s16, 2
      %s23 = sadd.s32 %s16, 1
      %s24 = ssub.s32 %s16, %s23
      %p25 = scmp.eq.s32.totalorder %s24, 0
      %s27 = sadd.s32 %s26, 1
      %s28 = scalar_select %p25, %s26, %s27
      %p31 = pneg %p25
      %p32 = scmp.eq.s32.totalorder %s16, 1
      %p33 = por %p31, %p32
      %p34 = scmp.ne.s32.totalorder %s26, %s29
      %p35 = scmp.eq.s32.totalorder %s16, 0
      %p36 = por %p34, %p35
      %p37 = scmp.ne.s32.totalorder %s26, %s29
      %p38 = scmp.eq.s32.totalorder %s21, 1
      %p39 = por %p37, %p38
      %p40 = scmp.ne.s32.totalorder %s29, %s30
      %p41 = scmp.eq.s32.totalorder %s21, 0
      %p42 = por %p40, %p41
      %p43 = scmp.ne.s32.totalorder %s29, %s30
      %p44 = scmp.eq.s32.totalorder %s22, 1
      %p45 = por %p43, %p44
      %p47 = scmp.ne.s32.totalorder %s30, %s46
      %p48 = scmp.eq.s32.totalorder %s22, 0
      %p49 = por %p47, %p48
      %s51 = sadd.s32 %s50, 1
      %p54 = scmp.eq.s32.totalorder %s16, 1
      %p55 = scmp.ne.s32.totalorder %s50, %s52
      %p56 = scmp.eq.s32.totalorder %s16, 0
      %p57 = por %p55, %p56
      %p58 = scmp.ne.s32.totalorder %s50, %s52
      %p59 = scmp.eq.s32.totalorder %s21, 1
      %p60 = por %p58, %p59
      %p61 = scmp.ne.s32.totalorder %s52, %s53
      %p62 = scmp.eq.s32.totalorder %s21, 0
      %p63 = por %p61, %p62
      %p64 = scmp.ne.s32.totalorder %s52, %s53
      %p65 = scmp.eq.s32.totalorder %s22, 1
      %p66 = por %p64, %p65
      %p68 = scmp.ne.s32.totalorder %s53, %s67
      %p69 = scmp.eq.s32.totalorder %s22, 0
      %p70 = por %p68, %p69
      %s72 = sadd.s32 %s71, 1
      %p75 = scmp.eq.s32.totalorder %s16, 1
      %p76 = scmp.ne.s32.totalorder %s71, %s73
      %p77 = scmp.eq.s32.totalorder %s16, 0
      %p78 = por %p76, %p77
      %p79 = scmp.ne.s32.totalorder %s71, %s73
      %p80 = scmp.eq.s32.totalorder %s21, 1
      %p81 = por %p79, %p80
      %p82 = scmp.ne.s32.totalorder %s73, %s74
      %p83 = scmp.eq.s32.totalorder %s21, 0
      %p84 = por %p82, %p83
      %p85 = scmp.ne.s32.totalorder %s73, %s74
      %p86 = scmp.eq.s32.totalorder %s22, 1
      %p87 = por %p85, %p86
      %p89 = scmp.ne.s32.totalorder %s74, %s88
      %p90 = scmp.eq.s32.totalorder %s22, 0
      %p91 = por %p89, %p90
      %s93 = sadd.s32 %s92, 1
      %p96 = scmp.eq.s32.totalorder %s16, 1
      %p97 = scmp.ne.s32.totalorder %s92, %s94
      %p98 = scmp.eq.s32.totalorder %s16, 0
      %p99 = por %p97, %p98
      %p100 = scmp.ne.s32.totalorder %s92, %s94
      %p101 = scmp.eq.s32.totalorder %s21, 1
      %p102 = por %p100, %p101
      %p103 = scmp.ne.s32.totalorder %s94, %s95
      %p104 = scmp.eq.s32.totalorder %s21, 0
      %p105 = por %p103, %p104
      %p106 = scmp.ne.s32.totalorder %s94, %s95
      %p107 = scmp.eq.s32.totalorder %s22, 1
      %p108 = por %p106, %p107
      %p110 = scmp.ne.s32.totalorder %s95, %s109
      %p111 = scmp.eq.s32.totalorder %s22, 0
      %p112 = por %p110, %p111
      %s114 = sadd.s32 %s113, 1
      %p117 = scmp.eq.s32.totalorder %s16, 1
      %p118 = scmp.ne.s32.totalorder %s113, %s115
      %p119 = scmp.eq.s32.totalorder %s16, 0
      %p120 = por %p118, %p119
      %p121 = scmp.ne.s32.totalorder %s113, %s115
      %p122 = scmp.eq.s32.totalorder %s21, 1
      %p123 = por %p121, %p122
      %p124 = scmp.ne.s32.totalorder %s115, %s116
      %p125 = scmp.eq.s32.totalorder %s21, 0
      %p126 = por %p124, %p125
      %p127 = scmp.ne.s32.totalorder %s115, %s116
      %p128 = scmp.eq.s32.totalorder %s22, 1
      %p129 = por %p127, %p128
      %p131 = scmp.ne.s32.totalorder %s116, %s130
      %p132 = scmp.eq.s32.totalorder %s22, 0
      %p133 = por %p131, %p132
      %s135 = sadd.s32 %s134, 1
      %p138 = scmp.eq.s32.totalorder %s16, 1
      %p139 = scmp.ne.s32.totalorder %s134, %s136
      %p140 = scmp.eq.s32.totalorder %s16, 0
      %p141 = por %p139, %p140
      %p142 = scmp.ne.s32.totalorder %s134, %s136
      %p143 = scmp.eq.s32.totalorder %s21, 1
      %p144 = por %p142, %p143
      %p145 = scmp.ne.s32.totalorder %s136, %s137
      %p146 = scmp.eq.s32.totalorder %s21, 0
      %p147 = por %p145, %p146
      %p148 = scmp.ne.s32.totalorder %s136, %s137
      %p149 = scmp.eq.s32.totalorder %s22, 1
      %p150 = por %p148, %p149
      %p152 = scmp.ne.s32.totalorder %s137, %s151
      %p153 = scmp.eq.s32.totalorder %s22, 0
      %p154 = por %p152, %p153
      %s156 = sadd.s32 %s155, 1
      %p159 = scmp.eq.s32.totalorder %s16, 1
      %p160 = scmp.ne.s32.totalorder %s155, %s157
      %p161 = scmp.eq.s32.totalorder %s16, 0
      %p162 = por %p160, %p161
      %p163 = scmp.ne.s32.totalorder %s155, %s157
      %p164 = scmp.eq.s32.totalorder %s21, 1
      %p165 = por %p163, %p164
      %p166 = scmp.ne.s32.totalorder %s157, %s158
      %p167 = scmp.eq.s32.totalorder %s21, 0
      %p168 = por %p166, %p167
      %p169 = scmp.ne.s32.totalorder %s157, %s158
      %p170 = scmp.eq.s32.totalorder %s22, 1
      %p171 = por %p169, %p170
      %p173 = scmp.ne.s32.totalorder %s158, %s172
      %p174 = scmp.eq.s32.totalorder %s22, 0
      %p175 = por %p173, %p174
      %s176 = ssub.s32 %s16, %s23
      %p177 = scmp.eq.s32.totalorder %s176, 0
      %s179 = sadd.s32 %s178, 1
      %s180 = scalar_select %p177, %s178, %s179
      %p183 = pneg %p177
      %p184 = scmp.eq.s32.totalorder %s16, 1
      %p185 = por %p183, %p184
      %p186 = scmp.ne.s32.totalorder %s178, %s181
      %p187 = scmp.eq.s32.totalorder %s16, 0
      %p188 = por %p186, %p187
      %p189 = scmp.ne.s32.totalorder %s178, %s181
      %p190 = scmp.eq.s32.totalorder %s21, 1
      %p191 = por %p189, %p190
      %p192 = scmp.ne.s32.totalorder %s181, %s182
      %p193 = scmp.eq.s32.totalorder %s21, 0
      %p194 = por %p192, %p193
      %p195 = scmp.ne.s32.totalorder %s181, %s182
      %p196 = scmp.eq.s32.totalorder %s22, 1
      %p197 = por %p195, %p196
      %p199 = scmp.ne.s32.totalorder %s182, %s198
      %p200 = scmp.eq.s32.totalorder %s22, 0
      %p201 = por %p199, %p200
      %p202 = scmp.le.s32.totalorder 1, %s16
      %p203 = scmp.lt.s32.totalorder %s16, 3
      %p204 = pnand %p202, %p203
      %p205 = pneg %p204
      // Predicated region
      $region9: #{mlp_forward.1} parent=5 // pred_check
        _
      $region10: #{mlp_forward.1} parent=5 // pred_check_branch
        %207 = sbr.rel (%p204) target = $region12
      $region11: #{mlp_forward.1} parent=5 // pred_region
        %s208 = ssub.s32 %s16, 1
        // Predicated region
        $region13: #{mlp_forward.1} parent=11 // pred_check
          %p209 = pneg %p63
        $region14: #{mlp_forward.1} parent=11 // pred_check_branch
          %211 = sbr.rel (%p209) target = $region16
        $region15: #{mlp_forward.1} parent=11 // pred_region
          _
        $region16: #{mlp_forward.1} parent=11 // pred_fallthru
          _
        // Predicated region
        $region17: #{mlp_forward.1} parent=11 // pred_check
          %p212 = pneg %p84
        $region18: #{mlp_forward.1} parent=11 // pred_check_branch
          %214 = sbr.rel (%p212) target = $region20
        $region19: #{mlp_forward.1} parent=11 // pred_region
          _
        $region20: #{mlp_forward.1} parent=11 // pred_fallthru
          _
        // Predicated region
        $region21: #{mlp_forward.1} parent=11 // pred_check
          %p215 = pneg %p105
        $region22: #{mlp_forward.1} parent=11 // pred_check_branch
          %217 = sbr.rel (%p215) target = $region24
        $region23: #{mlp_forward.1} parent=11 // pred_region
          _
        $region24: #{mlp_forward.1} parent=11 // pred_fallthru
          _
        // Predicated region
        $region25: #{mlp_forward.1} parent=11 // pred_check
          %p218 = pneg %p126
        $region26: #{mlp_forward.1} parent=11 // pred_check_branch
          %220 = sbr.rel (%p218) target = $region28
        $region27: #{mlp_forward.1} parent=11 // pred_region
          _
        $region28: #{mlp_forward.1} parent=11 // pred_fallthru
          _
        // Predicated region
        $region29: #{mlp_forward.1} parent=11 // pred_check
          %p221 = pneg %p147
        $region30: #{mlp_forward.1} parent=11 // pred_check_branch
          %223 = sbr.rel (%p221) target = $region32
        $region31: #{mlp_forward.1} parent=11 // pred_region
          _
        $region32: #{mlp_forward.1} parent=11 // pred_fallthru
          _
        // Predicated region
        $region33: #{mlp_forward.1} parent=11 // pred_check
          %p224 = pneg %p168
        $region34: #{mlp_forward.1} parent=11 // pred_check_branch
          %226 = sbr.rel (%p224) target = $region36
        $region35: #{mlp_forward.1} parent=11 // pred_region
          _
        $region36: #{mlp_forward.1} parent=11 // pred_fallthru
          _
      $region12: #{mlp_forward.1} parent=5 // pred_fallthru
        _
      %p227 = scmp.lt.s32.totalorder %s16, 2
      // Predicated region
      $region37: #{mlp_forward.1} parent=5 // pred_check
        %p228 = pneg %p227
      $region38: #{mlp_forward.1} parent=5 // pred_check_branch
        %230 = sbr.rel (%p228) target = $region40
      $region39: #{mlp_forward.1} parent=5 // pred_region
        // Predicated region
        $region41: #{mlp_forward.1} parent=39 // pred_check
          %p231 = pneg %p36
        $region42: #{mlp_forward.1} parent=39 // pred_check_branch
          %233 = sbr.rel (%p231) target = $region44
        $region43: #{mlp_forward.1} parent=39 // pred_region
          %s234 = sand.u32 %s26, 1
          %s235 = sand.u32 %s26, 1
          %s236 = smul.addr %s235, 32
          %s237 = scalar_lea.vmem [#allocation2], %s236
          %s238 = smul.u32 2, %s16
          %s239 = smul.addr %s238, 4
          %s240 = scalar_lea.vmem %s0, %s239
          // Predicated region
          $region45: #{mlp_forward.1} parent=43 // pred_check
            _
          $region46: #{mlp_forward.1} parent=43 // pred_check_branch
            %242 = sbr.rel (0) target = $region48
          $region47: #{mlp_forward.1} parent=43 // pred_region
            // Predicated region
            $region49: #{mlp_forward.1} parent=47 // pred_check
              _
            $region50: #{mlp_forward.1} parent=47 // pred_check_branch
              %244 = sbr.rel (0) target = $region52
            $region51: #{mlp_forward.1} parent=47 // pred_region
              // Predicated region
              $region64: #{mlp_forward.1} parent=51 // pred_check
                _
              $region65: #{mlp_forward.1} parent=51 // pred_check_branch
                %265 = sbr.rel (0) target = $region67
              $region66: #{mlp_forward.1} parent=51 // pred_region
                loop: start=0, step=1, limit=1
                $region68: #{mlp_forward.1} parent=66 // loop_pre_header
                  _
                $region69: #{mlp_forward.1} parent=66 // loop_header
                  %s267 = sphi 0, %s271
                  %p268 = scmp.ge.s32.totalorder %s267, 1
                  %s272 = sphi %s240, %s240
                  %s273 = sphi %s237, %s237
                $region70: #{mlp_forward.1} parent=66 // loop_header_branch
                  %270 = sbr.rel (%p268) target = $region74
                $region71: #{mlp_forward.1} parent=66 // loop_body
                  %v274 = vld [vmem:[%s272] sm:$0xff]
                  %275 = vst [vmem:[%s273] sm:$0xff] %v274
                  %v276 = vld [vmem:[%s272 + $0x10] sm:$0xff]
                  %277 = vst [vmem:[%s273 + $0x8] sm:$0xff] %v276
                  %v278 = vld [vmem:[%s272 + $0x20] sm:$0xff]
                  %279 = vst [vmem:[%s273 + $0x10] sm:$0xff] %v278
                  %v280 = vld [vmem:[%s272 + $0x30] sm:$0xff]
                  %281 = vst [vmem:[%s273 + $0x18] sm:$0xff] %v280
                $region72: #{mlp_forward.1} parent=66 // loop_footer
                  %s271 = sadd.s32 1, %s267
                $region73: #{mlp_forward.1} parent=66 // loop_footer_branch
                  %266 = sbr.rel target = $region69
                $region74: #{mlp_forward.1} parent=66 // loop_exit
                  _
              $region67: #{mlp_forward.1} parent=51 // pred_fallthru
                _
              // Predicated region
              $region75: #{mlp_forward.1} parent=51 // pred_check
                _
              $region76: #{mlp_forward.1} parent=51 // pred_check_branch
                %283 = sbr.rel target = $region78
              $region77: #{mlp_forward.1} parent=51 // pred_region
                _
              $region78: #{mlp_forward.1} parent=51 // pred_fallthru
                _
            $region52: #{mlp_forward.1} parent=47 // pred_fallthru
              _
            // Predicated region
            $region53: #{mlp_forward.1} parent=47 // pred_check
              _
            $region54: #{mlp_forward.1} parent=47 // pred_check_branch
              %246 = sbr.rel target = $region56
            $region55: #{mlp_forward.1} parent=47 // pred_region
              loop: start=0, step=1, limit=1
              $region57: #{mlp_forward.1} parent=55 // loop_pre_header
                _
              $region58: #{mlp_forward.1} parent=55 // loop_header
                %s249 = sphi 0, %s253
                %p250 = scmp.ge.s32.totalorder %s249, 1
                %s254 = sphi %s240, %s240
                %s255 = sphi %s237, %s237
              $region59: #{mlp_forward.1} parent=55 // loop_header_branch
                %252 = sbr.rel (%p250) target = $region63
              $region60: #{mlp_forward.1} parent=55 // loop_body
                %v256 = vld [vmem:[%s254] sm:$0xff]
                %257 = vst [vmem:[%s255] sm:$0xff] %v256
                %v258 = vld [vmem:[%s254 + $0x10] sm:$0xff]
                %259 = vst [vmem:[%s255 + $0x8] sm:$0xff] %v258
                %v260 = vld [vmem:[%s254 + $0x20] sm:$0xff]
                %261 = vst [vmem:[%s255 + $0x10] sm:$0xff] %v260
                %v262 = vld [vmem:[%s254 + $0x30] sm:$0xff]
                %263 = vst [vmem:[%s255 + $0x18] sm:$0xff] %v262
              $region61: #{mlp_forward.1} parent=55 // loop_footer
                %s253 = sadd.s32 1, %s249
              $region62: #{mlp_forward.1} parent=55 // loop_footer_branch
                %248 = sbr.rel target = $region58
              $region63: #{mlp_forward.1} parent=55 // loop_exit
                _
            $region56: #{mlp_forward.1} parent=47 // pred_fallthru
              _
          $region48: #{mlp_forward.1} parent=43 // pred_fallthru
            _
          %284 = vnop
        $region44: #{mlp_forward.1} parent=39 // pred_fallthru
          _
      $region40: #{mlp_forward.1} parent=5 // pred_fallthru
        _
      %p285 = scmp.le.s32.totalorder 1, %s16
      %p286 = scmp.lt.s32.totalorder %s16, 3
      %p287 = pnand %p285, %p286
      %p288 = pneg %p287
      // Predicated region
      $region79: #{mlp_forward.1} parent=5 // pred_check
        _
      $region80: #{mlp_forward.1} parent=5 // pred_check_branch
        %290 = sbr.rel (%p287) target = $region82
      $region81: #{mlp_forward.1} parent=5 // pred_region
        %s291 = ssub.s32 %s16, 1
        %s292 = sand.u32 %s29, 1
        %s293 = sand.u32 %s29, 1
        %s294 = smul.addr %s293, 32
        %s295 = scalar_lea.vmem [#allocation2], %s294
        // Predicated region
        $region83: #{mlp_forward.1} parent=81 // pred_check
          %p296 = pneg %p42
        $region84: #{mlp_forward.1} parent=81 // pred_check_branch
          %298 = sbr.rel (%p296) target = $region86
        $region85: #{mlp_forward.1} parent=81 // pred_region
          _
        $region86: #{mlp_forward.1} parent=81 // pred_fallthru
          _
        %s299 = sand.u32 %s29, 1
        %s300 = sand.u32 %s29, 1
        %s301 = smul.addr %s300, 32
        %s302 = scalar_lea.vmem [#allocation2], %s301
        %p303 = pneg %p42
        %p304 = pneg %p39
        %p305 = pneg %p63
        %p306 = pneg %p60
        %p307 = pneg %p84
        %p308 = pneg %p81
        %p309 = pneg %p105
        %p310 = pneg %p102
        %p311 = pneg %p126
        %p312 = pneg %p123
        %p313 = pneg %p147
        %p314 = pneg %p144
        %p315 = pneg %p168
        %p316 = pneg %p165
        %p317 = pneg %p194
        %p318 = pneg %p191
        %s319 = sand.u32 %s181, 1
        %s320 = scalar_lea.sflag [#allocation4], %s319
        %s321 = sand.u32 %s181, 1
        %s322 = smul.addr %s321, 16
        %s323 = scalar_lea.vmem [#allocation3], %s322
        %s324 = smul.u32 2, %s21
        %s325 = smul.u32 2, %s21
        %v327 = vld [vmem:[%s295] sm:$0xff]
        %v328 = vld [vmem:[%s295 + $0x8] sm:$0xff]
        %v329 = vld [vmem:[%s295 + $0x10] sm:$0xff]
        %v330 = vld [vmem:[%s295 + $0x18] sm:$0xff]
        %v331 = vld [vmem:[%s1] sm:$0xf]
        %v332 = vld [vmem:[%s1 + $0x4] sm:$0xf]
        %v333 = vld [vmem:[%s1 + $0x8] sm:$0xf]
        %v334 = vld [vmem:[%s1 + $0xc] sm:$0xf]
        %v335 = vld [vmem:[%s1 + $0x10] sm:$0xf]
        %v336 = vld [vmem:[%s1 + $0x14] sm:$0xf]
        %v337 = vld [vmem:[%s1 + $0x18] sm:$0xf]
        %v338 = vld [vmem:[%s1 + $0x1c] sm:$0xf]
        %v339 = vld [vmem:[%s2] sm:$0xff]
        %v340 = vld [vmem:[%s2 + $0x8] sm:$0xff]
        %v341 = vld [vmem:[%s2 + $0x10] sm:$0xff]
        %v342 = vld [vmem:[%s2 + $0x18] sm:$0xff]
        %v343 = vld [vmem:[%s2 + $0x20] sm:$0xff]
        %v344 = vld [vmem:[%s2 + $0x28] sm:$0xff]
        %v345 = vld [vmem:[%s2 + $0x30] sm:$0xff]
        %v346 = vld [vmem:[%s2 + $0x38] sm:$0xff]
        %348 = vset.pattern.permute.xlu0 0
        %349 = vperm.xlu0 %348, %v339
        %v350 = vpop.permute.xlu0 %349
        %353 = vset.pattern.permute.xlu0 0
        %354 = vperm.xlu0 %353, %v340
        %v355 = vpop.permute.xlu0 %354
        %358 = vset.pattern.permute.xlu0 0
        %359 = vperm.xlu0 %358, %v341
        %v360 = vpop.permute.xlu0 %359
        %363 = vset.pattern.permute.xlu0 0
        %364 = vperm.xlu0 %363, %v342
        %v365 = vpop.permute.xlu0 %364
        %368 = vset.pattern.permute.xlu0 0
        %369 = vperm.xlu0 %368, %v343
        %v370 = vpop.permute.xlu0 %369
        %373 = vset.pattern.permute.xlu0 0
        %374 = vperm.xlu0 %373, %v344
        %v375 = vpop.permute.xlu0 %374
        %378 = vset.pattern.permute.xlu0 0
        %379 = vperm.xlu0 %378, %v345
        %v380 = vpop.permute.xlu0 %379
        %383 = vset.pattern.permute.xlu0 0
        %384 = vperm.xlu0 %383, %v346
        %v385 = vpop.permute.xlu0 %384
        %v395 = vunpack.c.l.b16 %v331
        %v396 = vunpack.c.l.b16 %v332
        %v397 = vunpack.c.l.b16 %v333
        %v398 = vunpack.c.l.b16 %v334
        %v399 = vunpack.c.l.b16 %v335
        %v400 = vunpack.c.l.b16 %v336
        %v401 = vunpack.c.l.b16 %v337
        %v402 = vunpack.c.l.b16 %v338
        %v403 = vpack.c.b16 %v396, %v395
        %v404 = vpack.c.b16 %v398, %v397
        %v405 = vpack.c.b16 %v400, %v399
        %v406 = vpack.c.b16 %v402, %v401
        %v411 = vunpack.c.l.b16 %v327
        %v412 = vunpack.c.h.b16 %v327
        %v413 = vunpack.c.l.b16 %v328
        %v414 = vunpack.c.h.b16 %v328
        %v415 = vunpack.c.l.b16 %v329
        %v416 = vunpack.c.h.b16 %v329
        %v417 = vunpack.c.l.b16 %v330
        %v418 = vunpack.c.h.b16 %v330
        %v419 = vpack.c.b16 %v413, %v411
        %v420 = vpack.c.b16 %v414, %v412
        %v421 = vpack.c.b16 %v417, %v415
        %v422 = vpack.c.b16 %v418, %v416
        %vm427 = vcmask 261120
        %v429 = vsel %vm427, %v403, 0
        %v432 = vsel %vm427, %v404, 0
        %v435 = vsel %vm427, %v405, 0
        %v438 = vsel %vm427, %v406, 0
        %440 = vmatprep.subr.bf16.mxu0 %v420
        %441 = vmatpush1.bf16.msra.mxu0 %v419
        %442 = vmatprep.subr.bf16.mxu0 %v422
        %443 = vmatpush1.bf16.msra.mxu0 %v421
        %444 = vmatprep.subr.bf16.mxu0 0
        %445 = vmatpush1.bf16.msra.mxu0 0
        %446 = vmatprep.subr.bf16.mxu0 0
        %447 = vmatpush1.bf16.msra.mxu0 0
        %448 = vmatprep.subr.bf16.mxu0 0
        %449 = vmatpush1.bf16.msra.mxu0 0
        %450 = vmatprep.subr.bf16.mxu0 0
        %451 = vmatpush1.bf16.msra.mxu0 0
        %452 = vmatprep.subr.bf16.mxu0 0
        %453 = vmatpush1.bf16.msra.mxu0 0
        %454 = vmatprep.subr.bf16.mxu0 0
        %455 = vmatpush1.bf16.msra.mxu0 0
        %456 = vmatprep.subr.bf16.mxu0 0
        %457 = vmatpush1.bf16.msra.mxu0 0
        %458 = vmatprep.subr.bf16.mxu0 0
        %459 = vmatpush1.bf16.msra.mxu0 0
        %460 = vmatprep.subr.bf16.mxu0 0
        %461 = vmatpush1.bf16.msra.mxu0 0
        %462 = vmatprep.subr.bf16.mxu0 0
        %463 = vmatpush1.bf16.msra.mxu0 0
        %464 = vmatprep.subr.bf16.mxu0 0
        %465 = vmatpush1.bf16.msra.mxu0 0
        %466 = vmatprep.subr.bf16.mxu0 0
        %467 = vmatpush1.bf16.msra.mxu0 0
        %468 = vmatprep.subr.bf16.mxu0 0
        %469 = vmatpush1.bf16.msra.mxu0 0
        %470 = vmatprep.subr.bf16.mxu0 0
        %471 = vmatpush1.bf16.msra.mxu0 0
        %472 = vmatprep.mubr.bf16.mxu0 0
        %473 = vmatmul.mubr.bf16.gmra.mrb[0].mxu0 %v429
        %v474 = vpop.f32.mrb[0].mxu0
        %v475 = vadd.f32 %v350, %v474
        %v476 = vpop.f32.mrb[0].mxu0
        %v477 = vadd.f32 %v350, %v476
        %v478 = vpop.f32.mrb[0].mxu0
        %v479 = vadd.f32 %v355, %v478
        %v480 = vpop.f32.mrb[0].mxu0
        %v481 = vadd.f32 %v355, %v480
        %482 = vmatprep.mubr.bf16.mxu0 0
        %483 = vmatmul.mubr.bf16.gmra.mrb[0].mxu0 %v432
        %v484 = vpop.f32.mrb[0].mxu0
        %v485 = vadd.f32 %v360, %v484
        %v486 = vpop.f32.mrb[0].mxu0
        %v487 = vadd.f32 %v360, %v486
        %v488 = vpop.f32.mrb[0].mxu0
        %v489 = vadd.f32 %v365, %v488
        %v490 = vpop.f32.mrb[0].mxu0
        %v491 = vadd.f32 %v365, %v490
        %492 = vmatprep.mubr.bf16.mxu0 0
        %493 = vmatmul.mubr.bf16.gmra.mrb[0].mxu0 %v435
        %v494 = vpop.f32.mrb[0].mxu0
        %v495 = vadd.f32 %v370, %v494
        %v496 = vpop.f32.mrb[0].mxu0
        %v497 = vadd.f32 %v370, %v496
        %v498 = vpop.f32.mrb[0].mxu0
        %v499 = vadd.f32 %v375, %v498
        %v500 = vpop.f32.mrb[0].mxu0
        %v501 = vadd.f32 %v375, %v500
        %502 = vmatprep.mubr.bf16.mxu0 0
        %503 = vmatmul.mubr.bf16.gmra.mrb[0].mxu0 %v438
        %v504 = vpop.f32.mrb[0].mxu0
        %v505 = vadd.f32 %v380, %v504
        %v506 = vpop.f32.mrb[0].mxu0
        %v507 = vadd.f32 %v380, %v506
        %v508 = vpop.f32.mrb[0].mxu0
        %v509 = vadd.f32 %v385, %v508
        %v510 = vpop.f32.mrb[0].mxu0
        %v511 = vadd.f32 %v385, %v510
        %512 = vdwg.mxu0
        %v513 = vmax.f32 %v475, 0.0
        %v514 = vmax.f32 %v477, 0.0
        %v515 = vmax.f32 %v479, 0.0
        %v516 = vmax.f32 %v481, 0.0
        %v517 = vmax.f32 %v485, 0.0
        %v518 = vmax.f32 %v487, 0.0
        %v519 = vmax.f32 %v489, 0.0
        %v520 = vmax.f32 %v491, 0.0
        %v521 = vmax.f32 %v495, 0.0
        %v522 = vmax.f32 %v497, 0.0
        %v523 = vmax.f32 %v499, 0.0
        %v524 = vmax.f32 %v501, 0.0
        %v525 = vmax.f32 %v505, 0.0
        %v526 = vmax.f32 %v507, 0.0
        %v527 = vmax.f32 %v509, 0.0
        %v528 = vmax.f32 %v511, 0.0
        %v529 = vld [vmem:[%s3] sm:$0xf]
        %v530 = vld [vmem:[%s3 + $0x4] sm:$0xf]
        %v531 = vld [vmem:[%s3 + $0x8] sm:$0xf]
        %v532 = vld [vmem:[%s3 + $0xc] sm:$0xf]
        %v533 = vpack.c.bf16 %v515, %v513
        %v534 = vpack.c.bf16 %v516, %v514
        %v535 = vpack.c.bf16 %v519, %v517
        %v536 = vpack.c.bf16 %v520, %v518
        %v537 = vpack.c.bf16 %v523, %v521
        %v538 = vpack.c.bf16 %v524, %v522
        %v539 = vpack.c.bf16 %v527, %v525
        %v540 = vpack.c.bf16 %v528, %v526
        %v541 = vld [vmem:[%s4] sm:$0xff]
        %v542 = vld [vmem:[%s4 + $0x8] sm:$0xff]
        %v543 = vld [vmem:[%s4 + $0x10] sm:$0xff]
        %v544 = vld [vmem:[%s4 + $0x18] sm:$0xff]
        %546 = vset.pattern.permute.xlu0 0
        %547 = vperm.xlu0 %546, %v541
        %v548 = vpop.permute.xlu0 %547
        %551 = vset.pattern.permute.xlu0 0
        %552 = vperm.xlu0 %551, %v542
        %v553 = vpop.permute.xlu0 %552
        %556 = vset.pattern.permute.xlu0 0
        %557 = vperm.xlu0 %556, %v543
        %v558 = vpop.permute.xlu0 %557
        %561 = vset.pattern.permute.xlu0 0
        %562 = vperm.xlu0 %561, %v544
        %v563 = vpop.permute.xlu0 %562
        %v569 = vunpack.c.l.b16 %v529
        %v570 = vunpack.c.l.b16 %v530
        %v571 = vunpack.c.l.b16 %v531
        %v572 = vunpack.c.l.b16 %v532
        %v573 = vpack.c.b16 %v570, %v569
        %v574 = vpack.c.b16 %v572, %v571
        %vm575 = vcmask 523264
        %v577 = vsel %vm575, %v573, 0
        %v580 = vsel %vm575, %v574, 0
        %582 = vmatprep.subr.bf16.mxu0 %v534
        %583 = vmatpush1.bf16.msra.mxu0 %v533
        %584 = vmatprep.subr.bf16.mxu0 %v536
        %585 = vmatpush1.bf16.msra.mxu0 %v535
        %586 = vmatprep.subr.bf16.mxu0 %v538
        %587 = vmatpush1.bf16.msra.mxu0 %v537
        %588 = vmatprep.subr.bf16.mxu0 %v540
        %589 = vmatpush1.bf16.msra.mxu0 %v539
        %590 = vmatprep.subr.bf16.mxu0 0
        %591 = vmatpush1.bf16.msra.mxu0 0
        %592 = vmatprep.subr.bf16.mxu0 0
        %593 = vmatpush1.bf16.msra.mxu0 0
        %594 = vmatprep.subr.bf16.mxu0 0
        %595 = vmatpush1.bf16.msra.mxu0 0
        %596 = vmatprep.subr.bf16.mxu0 0
        %597 = vmatpush1.bf16.msra.mxu0 0
        %598 = vmatprep.subr.bf16.mxu0 0
        %599 = vmatpush1.bf16.msra.mxu0 0
        %600 = vmatprep.subr.bf16.mxu0 0
        %601 = vmatpush1.bf16.msra.mxu0 0
        %602 = vmatprep.subr.bf16.mxu0 0
        %603 = vmatpush1.bf16.msra.mxu0 0
        %604 = vmatprep.subr.bf16.mxu0 0
        %605 = vmatpush1.bf16.msra.mxu0 0
        %606 = vmatprep.subr.bf16.mxu0 0
        %607 = vmatpush1.bf16.msra.mxu0 0
        %608 = vmatprep.subr.bf16.mxu0 0
        %609 = vmatpush1.bf16.msra.mxu0 0
        %610 = vmatprep.subr.bf16.mxu0 0
        %611 = vmatpush1.bf16.msra.mxu0 0
        %612 = vmatprep.subr.bf16.mxu0 0
        %613 = vmatpush1.bf16.msra.mxu0 0
        %614 = vmatprep.mubr.bf16.mxu0 0
        %615 = vmatmul.mubr.bf16.gmra.mrb[0].mxu0 %v577
        %v616 = vpop.f32.mrb[0].mxu0
        %v617 = vadd.f32 %v548, %v616
        %v618 = vpop.f32.mrb[0].mxu0
        %v619 = vadd.f32 %v548, %v618
        %v620 = vpop.f32.mrb[0].mxu0
        %v621 = vadd.f32 %v553, %v620
        %v622 = vpop.f32.mrb[0].mxu0
        %v623 = vadd.f32 %v553, %v622
        %624 = vmatprep.mubr.bf16.mxu0 0
        %625 = vmatmul.mubr.bf16.gmra.mrb[0].mxu0 %v580
        %v626 = vpop.f32.mrb[0].mxu0
        %v627 = vadd.f32 %v558, %v626
        %v628 = vpop.f32.mrb[0].mxu0
        %v629 = vadd.f32 %v558, %v628
        %v630 = vpop.f32.mrb[0].mxu0
        %v631 = vadd.f32 %v563, %v630
        %v632 = vpop.f32.mrb[0].mxu0
        %v633 = vadd.f32 %v563, %v632
        %634 = vdwg.mxu0
        %v635 = vmax.f32 %v617, 0.0
        %v636 = vmax.f32 %v619, 0.0
        %v637 = vmax.f32 %v621, 0.0
        %v638 = vmax.f32 %v623, 0.0
        %v639 = vmax.f32 %v627, 0.0
        %v640 = vmax.f32 %v629, 0.0
        %v641 = vmax.f32 %v631, 0.0
        %v642 = vmax.f32 %v633, 0.0
        %v643 = vld [vmem:[%s5] sm:$0xf]
        %v644 = vpack.c.bf16 %v637, %v635
        %v645 = vpack.c.bf16 %v638, %v636
        %v646 = vpack.c.bf16 %v641, %v639
        %v647 = vpack.c.bf16 %v642, %v640
        %v648 = vld [vmem:[%s6] sm:$0xff]
        %650 = vset.pattern.permute.xlu0 0
        %651 = vperm.xlu0 %650, %v648
        %v652 = vpop.permute.xlu0 %651
        %v655 = vsel %vm427, %v643, 0
        %657 = vmatprep.subr.bf16.mxu0 %v645
        %658 = vmatpush1.bf16.msra.mxu0 %v644
        %659 = vmatprep.subr.bf16.mxu0 %v647
        %660 = vmatpush1.bf16.msra.mxu0 %v646
        %661 = vmatprep.subr.bf16.mxu0 0
        %662 = vmatpush1.bf16.msra.mxu0 0
        %663 = vmatprep.subr.bf16.mxu0 0
        %664 = vmatpush1.bf16.msra.mxu0 0
        %665 = vmatprep.subr.bf16.mxu0 0
        %666 = vmatpush1.bf16.msra.mxu0 0
        %667 = vmatprep.subr.bf16.mxu0 0
        %668 = vmatpush1.bf16.msra.mxu0 0
        %669 = vmatprep.subr.bf16.mxu0 0
        %670 = vmatpush1.bf16.msra.mxu0 0
        %671 = vmatprep.subr.bf16.mxu0 0
        %672 = vmatpush1.bf16.msra.mxu0 0
        %673 = vmatprep.subr.bf16.mxu0 0
        %674 = vmatpush1.bf16.msra.mxu0 0
        %675 = vmatprep.subr.bf16.mxu0 0
        %676 = vmatpush1.bf16.msra.mxu0 0
        %677 = vmatprep.subr.bf16.mxu0 0
        %678 = vmatpush1.bf16.msra.mxu0 0
        %679 = vmatprep.subr.bf16.mxu0 0
        %680 = vmatpush1.bf16.msra.mxu0 0
        %681 = vmatprep.subr.bf16.mxu0 0
        %682 = vmatpush1.bf16.msra.mxu0 0
        %683 = vmatprep.subr.bf16.mxu0 0
        %684 = vmatpush1.bf16.msra.mxu0 0
        %685 = vmatprep.subr.bf16.mxu0 0
        %686 = vmatpush1.bf16.msra.mxu0 0
        %687 = vmatprep.subr.bf16.mxu0 0
        %688 = vmatpush1.bf16.msra.mxu0 0
        %689 = vmatprep.mubr.bf16.mxu0 0
        %690 = vmatmul.mubr.bf16.gmra.mrb[0].mxu0 %v655
        %v691 = vpop.f32.mrb[0].mxu0
        %v692 = vadd.f32 %v652, %v691
        %v693 = vpop.f32.mrb[0].mxu0
        %v694 = vadd.f32 %v652, %v693
        %v695 = vpop.f32.mrb[0].mxu0
        %v696 = vpop.f32.mrb[0].mxu0
        %697 = vdwg.mxu0
        %698 = vst [vmem:[%s323] sm:$0xff] %v692
        %699 = vst [vmem:[%s323 + $0x8] sm:$0xff] %v694
        %s700 = sand.u32 %s181, 1
        %s701 = scalar_lea.sflag [#allocation4], %s700
        %s702 = sand.u32 %s181, 1
        %s703 = smul.addr %s702, 16
        %s704 = scalar_lea.vmem [#allocation3], %s703
        // Predicated region
        $region87: #{mlp_forward.1} parent=81 // pred_check
          %p705 = pneg %p191
        $region88: #{mlp_forward.1} parent=81 // pred_check_branch
          %707 = sbr.rel (%p705) target = $region90
        $region89: #{mlp_forward.1} parent=81 // pred_region
          %s708 = smul.u32 2, %s21
          %s710 = ssub.s32 256, 256
          %711 = vsyncadd %s701, %s710
          %s712 = smul.addr %s708, 128
          %s713 = scalar_lea.hbm %s7, %s712
          %s715 = sshll.u32 %s704, 4
          %s716 = int_to_ptr.vmem [resolvable:$true] %s715
          %718 = dma.vmem_to_hbm [thread:$0]  %s716, 256, %s713, %s701
        $region90: #{mlp_forward.1} parent=81 // pred_fallthru
          _
      $region82: #{mlp_forward.1} parent=5 // pred_fallthru
        _
      %p719 = scmp.le.s32.totalorder 2, %s16
      // Predicated region
      $region91: #{mlp_forward.1} parent=5 // pred_check
        %p720 = pneg %p719
      $region92: #{mlp_forward.1} parent=5 // pred_check_branch
        %722 = sbr.rel (%p720) target = $region94
      $region93: #{mlp_forward.1} parent=5 // pred_region
        %s723 = ssub.s32 %s16, 2
        // Predicated region
        $region95: #{mlp_forward.1} parent=93 // pred_check
          %p724 = pneg %p197
        $region96: #{mlp_forward.1} parent=93 // pred_check_branch
          %726 = sbr.rel (%p724) target = $region98
        $region97: #{mlp_forward.1} parent=93 // pred_region
          %s727 = sand.u32 %s182, 1
          %s728 = scalar_lea.sflag [#allocation4], %s727
          %s729 = sand.u32 %s182, 1
          %s730 = smul.addr %s729, 16
          %s731 = scalar_lea.vmem [#allocation3], %s730
          %732 = dma.done %s728, 256
        $region98: #{mlp_forward.1} parent=93 // pred_fallthru
          _
      $region94: #{mlp_forward.1} parent=5 // pred_fallthru
        _
    $region6: #{mlp_forward.1} parent=1 // loop_footer
      %s20 = sadd.s32 1, %s16
    $region7: #{mlp_forward.1} parent=1 // loop_footer_branch
      %15 = sbr.rel target = $region3
    $region8: #{mlp_forward.1} parent=1 // loop_exit
      _
    %733 = vsyncpa [#allocation4], 1
    %s734 = scalar_lea.sflag [#allocation4], 1
    %735 = vsyncpa %s734, 1

</llo_original>
